<compile_context>
chip_gen: v6e
topology: v6e:2x2x1
jax: 0.10.0
libtpu: 0.0.40
codegen_flags: <defaults>
</compile_context>

<pallas_src>
import functools

import jax
import jax.numpy as jnp
from jax.experimental import pallas as pl
from jax.experimental.pallas import tpu as pltpu

_BIG = 1e30  # finite sentinel for masked max/min


def _sum2(x):
    """Sum a (P, m, m) tensor over its last two axes -> (P, 1, 1)."""
    return jnp.sum(jnp.sum(x, axis=2, keepdims=True), axis=1, keepdims=True)


def _part_adacont_kernel(col_ref, row_ref, feat_ref, gl_ref, out_ref,
                         *, pos_thres, neg_thres):
    colp = col_ref[...]        # (P, m, 3) f32: lanes    = [label, label_type, |x|^2]
    rowp = row_ref[...]        # (P, 3, m) f32: sublanes = [label, label_type, |x|^2]
    xb = feat_ref[...]         # (P, m, d_pad) bf16 (zero-padded feature)
    gl = gl_ref[...]           # (m, m) f32, broadcasts over the part axis

    lab_i, lt_i, x2_i = colp[:, :, 0:1], colp[:, :, 1:2], colp[:, :, 2:3]   # (P, m, 1)
    lab_j, lt_j, x2_j = rowp[:, 0:1, :], rowp[:, 1:2, :], rowp[:, 2:3, :]   # (P, 1, m)

    # Gram matrix on the MXU (bf16 inputs, f32 accumulation).
    # TODO(synk): if the bundle dump shows a per-part vxpose next to the
    # vmatmuls (RHS contracted on its last dim), pre-transpose the feature in
    # the wrapper instead.
    xx = jnp.einsum("pmd,pkd->pmk", xb, xb, preferred_element_type=jnp.float32)
    dist = jnp.sqrt(jnp.maximum(x2_i + x2_j - 2.0 * xx, 0.0))               # (P, m, m)

    hp_mask = lab_i == lab_j                                                # (P, m, m)
    # (hn*mask1 + hn*mask2 > 0)  ==  hn & (mask1 | mask2)
    true_hn = jnp.logical_not(hp_mask) & ((lt_i > 0.0) | (lt_i < lt_j))
    noise = jnp.logical_not(hp_mask | true_hn)

    zeros = jnp.zeros((xb.shape[0], 1, 1), jnp.float32)
    hp_loss = hp_cnt = hn_loss = hn_cnt = zeros

    # pos_thres/neg_thres are static -> inactive branch is elided at trace time.
    if pos_thres > -1:
        # Row-wise max over true positives (diag is always a positive -> never empty).
        hp_max = jnp.max(jnp.where(hp_mask, dist, -_BIG), axis=2, keepdims=True)
        hinge = dist - hp_max * ((3.0 - gl) * 0.5)       # coeff stays (m,m) pre-broadcast
        act = noise & (gl > pos_thres) & (hinge > 0.0)   # relu(h)!=0  <=>  h>0
        hp_loss = _sum2(jnp.where(act, hinge, 0.0))
        hp_cnt = _sum2(act.astype(jnp.float32))

    if neg_thres > -1:
        # Row-wise min over true hard negatives.
        hn_min = jnp.min(jnp.where(true_hn, dist, _BIG), axis=2, keepdims=True)
        # Guard anchors with no true hard negative (torch per-anchor loop is
        # undefined there); derived from hn_min -> no extra (P,m,m) reduction.
        hn_valid = hn_min < _BIG
        hinge = hn_min * ((1.0 - gl) * 0.5) - dist
        act = noise & (gl < neg_thres) & hn_valid & (hinge > 0.0)
        hn_loss = _sum2(jnp.where(act, hinge, 0.0))
        hn_cnt = _sum2(act.astype(jnp.float32))

    # Single lane-dense output block: lanes 0..3 carry the four per-part scalars.
    lane = jax.lax.broadcasted_iota(jnp.int32, out_ref.shape, 2)
    out_ref[...] = (jnp.where(lane == 0, hp_loss, 0.0)
                    + jnp.where(lane == 1, hp_cnt, 0.0)
                    + jnp.where(lane == 2, hn_loss, 0.0)
                    + jnp.where(lane == 3, hn_cnt, 0.0))


def _vmem_budget():
    """(bytes usable for P sizing, vmem_limit_bytes for the compiler)."""
    cap = None
    try:
        info = pltpu.get_tpu_info()
        cap = int(getattr(info, "vmem_capacity_bytes", 0)) or None
    except Exception:                                        # pragma: no cover
        cap = None
    if cap is None:
        cap = 64 * 1024 * 1024          # conservative (v7x-sized) fallback
    vmem_limit = max(cap - 16 * (1 << 20), cap // 2)         # 112 MiB v5e/v6e, 48 MiB v7x
    p_budget = max(int(vmem_limit * 0.8), 8 * (1 << 20))     # headroom for compiler temps
    return p_budget, int(vmem_limit)


def _choose_parts_per_step(n, m, d_pad, feat_itemsize, budget):
    """Largest P whose per-step working set fits the generation-aware budget."""
    m8 = -(-m // 8) * 8
    m128 = -(-m // 128) * 128
    n_live_mm = 12                       # conservative peak count of live (m,m) f32 temps
    per_part = (2 * (m8 * d_pad * feat_itemsize)   # double-buffered feature slab
                + 2 * (m8 * 128 * 4)               # packed column stream (lane-padded)
                + 2 * (8 * m128 * 4)               # packed row stream (sublane-padded)
                + n_live_mm * (m8 * m128 * 4)      # live (m,m) intermediates
                + 2 * (8 * 128 * 4))               # output row
    fixed = 2 * (m8 * m128 * 4)                    # shared gl_sim tile (double-buffered)
    p = max(1, (budget - fixed) // per_part)
    return int(min(p, n))


@functools.partial(jax.jit, static_argnames=("pos_thres", "neg_thres", "compute_dtype"))
def part_adacont_loss(feature, label, label_type, gl_sim, *,
                      pos_thres=-1.0, neg_thres=-1.0, compute_dtype=jnp.bfloat16):
    n, m, d = feature.shape
    pos_active = pos_thres > -1
    neg_active = neg_thres > -1
    if not (pos_active or neg_active):
        z = jnp.float32(0.0)
        return z, z, z, z

    # Cast once in the wrapper (halves feature HBM->VMEM traffic for bf16) and
    # zero-pad the feature dim to a lane-dense multiple of 128 only when needed
    # (Gram matrix / squared norms are unchanged by zero padding).
    # compute_dtype=jnp.float32 recovers full f32 matmul semantics if needed.
    xb = feature.astype(compute_dtype)
    x2 = jnp.sum(xb.astype(jnp.float32) ** 2, axis=2)                     # (n, m)
    d_pad = -(-d // 128) * 128
    if d_pad != d:
        # TODO(synk): for HBM-bound cases (small m, large n*d) ship the unpadded
        # f32 feature and cast/contract in-kernel instead of this pad+cast pass.
        xb = jnp.pad(xb, ((0, 0), (0, 0), (0, d_pad - d)))

    labf = label.astype(jnp.float32)
    ltf = label_type.astype(jnp.float32)
    # Pack label / label_type / |x|^2 once in both layouts so the kernel needs
    # no in-kernel transposes and only two tiny extra DMA streams.
    col_pack = jnp.stack([labf, ltf, x2], axis=2)                         # (n, m, 3)
    row_pack = jnp.stack([labf, ltf, x2], axis=1)                         # (n, 3, m)
    gl = gl_sim.astype(jnp.float32)

    budget, vmem_limit = _vmem_budget()
    p = _choose_parts_per_step(n, m, d_pad, jnp.dtype(compute_dtype).itemsize, budget)
    steps = -(-n // p)
    if n >= 2:
        steps = max(steps, 2)        # keep both v7x TensorCores busy
        steps += steps % 2           # and give them an even split
    p = -(-n // steps)
    n_pad = steps * p
    if n_pad != n:
        pad = ((0, n_pad - n), (0, 0), (0, 0))
        xb = jnp.pad(xb, pad)
        col_pack = jnp.pad(col_pack, pad)
        row_pack = jnp.pad(row_pack, pad)

    kernel = functools.partial(_part_adacont_kernel,
                               pos_thres=float(pos_thres), neg_thres=float(neg_thres))

    out = pl.pallas_call(
        kernel,
        out_shape=jax.ShapeDtypeStruct((n_pad, 1, 128), jnp.float32),
        grid=(steps,),
        in_specs=[
            pl.BlockSpec((p, m, 3), lambda b: (b, 0, 0)),        # packed column stream
            pl.BlockSpec((p, 3, m), lambda b: (b, 0, 0)),        # packed row stream
            pl.BlockSpec((p, m, d_pad), lambda b: (b, 0, 0)),    # feature slab (bf16)
            pl.BlockSpec((m, m), lambda b: (0, 0)),              # gl_sim (shared tile)
        ],
        out_specs=pl.BlockSpec((p, 1, 128), lambda b: (b, 0, 0)),
        compiler_params=pltpu.CompilerParams(
            dimension_semantics=("parallel",),                   # v7x: shard parts over 2 TCs
            vmem_limit_bytes=vmem_limit),
    )(col_pack, row_pack, xb, gl)

    out = out[:n, 0, :4]                                         # (n, 4)
    hp_loss, hp_cnt, hn_loss, hn_cnt = out[:, 0], out[:, 1], out[:, 2], out[:, 3]

    zero = jnp.float32(0.0)
    if pos_active:
        hp_mean = jnp.where(hp_cnt > 0, hp_loss / jnp.maximum(hp_cnt, 1.0), 0.0)
        hp_out, hp_cnt_out = jnp.mean(hp_mean), jnp.mean(hp_cnt)
    else:
        hp_out, hp_cnt_out = zero, zero
    if neg_active:
        hn_mean = jnp.where(hn_cnt > 0, hn_loss / jnp.maximum(hn_cnt, 1.0), 0.0)
        hn_out, hn_cnt_out = jnp.mean(hn_mean), jnp.mean(hn_cnt)
    else:
        hn_out, hn_cnt_out = zero, zero
    return hp_out, hn_out, hp_cnt_out, hn_cnt_out


def _reference(feature, label, label_type, gl_sim, pos_thres, neg_thres,
               compute_dtype=jnp.bfloat16):
    """Pure-JAX mirror of the torch forward (matching the kernel's precision)."""
    n, m, d = feature.shape
    xb = feature.astype(compute_dtype)
    x2 = jnp.sum(xb.astype(jnp.float32) ** 2, axis=2)
    d_pad = -(-d // 128) * 128
    if d_pad != d:
        xb = jnp.pad(xb, ((0, 0), (0, 0), (0, d_pad - d)))
    xx = jnp.einsum("nmd,nkd->nmk", xb, xb, preferred_element_type=jnp.float32)
    dist = jnp.sqrt(jnp.maximum(x2[:, :, None] + x2[:, None, :] - 2.0 * xx, 0.0))

    hp_mask = label[:, :, None] == label[:, None, :]
    hn_mask = ~hp_mask
    true_hn = hn_mask & ((label_type[:, :, None] > 0) |
                         (label_type[:, :, None] < label_type[:, None, :]))
    noise = ~(hp_mask | true_hn)
    gl = jnp.broadcast_to(gl_sim[None].astype(jnp.float32), (n, m, m))
    pred_hp = noise & (gl > pos_thres)
    hn_valid = jnp.any(true_hn, axis=2, keepdims=True)
    pred_hn = noise & (gl < neg_thres) & hn_valid

    hp_max = jnp.max(jnp.where(hp_mask, dist, -_BIG), axis=2, keepdims=True)
    hn_min = jnp.min(jnp.where(true_hn, dist, _BIG), axis=2, keepdims=True)
    hp_elem = jnp.where(pred_hp, jnp.maximum(dist - hp_max * ((3.0 - gl) * 0.5), 0.0), 0.0)
    hn_elem = jnp.where(pred_hn, jnp.maximum(hn_min * ((1.0 - gl) * 0.5) - dist, 0.0), 0.0)

    hp_loss = jnp.sum(hp_elem, axis=(1, 2))
    hp_cnt = jnp.sum(hp_elem != 0, axis=(1, 2)).astype(jnp.float32)
    hn_loss = jnp.sum(hn_elem, axis=(1, 2))
    hn_cnt = jnp.sum(hn_elem != 0, axis=(1, 2)).astype(jnp.float32)

    def _fin(loss, cnt, thr):
        if thr > -1:
            mean = jnp.where(cnt > 0, loss / jnp.maximum(cnt, 1.0), 0.0)
            return jnp.mean(mean), jnp.mean(cnt)
        return jnp.float32(0.0), jnp.float32(0.0)

    hp_o, hp_c = _fin(hp_loss, hp_cnt, pos_thres)
    hn_o, hn_c = _fin(hn_loss, hn_cnt, neg_thres)
    return hp_o, hn_o, hp_c, hn_c


if __name__ == "__main__":
    key = jax.random.PRNGKey(0)
    n, m, d = 4, 8, 32          # parts, batch, feat_dim
    k1, k2 = jax.random.split(key)
    feature = jax.random.normal(k1, (n, m, d), dtype=jnp.float32)
    base_label = jnp.array([0, 0, 1, 1, 2, 2, 3, 3], dtype=jnp.int32)
    label = jnp.tile(base_label[None, :], (n, 1))
    base_type = jnp.array([1, 0, 1, 0, 0, 0, 1, 0], dtype=jnp.int32)
    label_type = jnp.tile(base_type[None, :], (n, 1))
    gl_sim = jax.random.uniform(k2, (m, m), dtype=jnp.float32, minval=-1.0, maxval=1.0)

    pos_thres, neg_thres = 0.2, 0.1   # > -1 so both branches of the loss are active

    # Both branches active.
    out = part_adacont_loss(feature, label, label_type, gl_sim,
                            pos_thres=pos_thres, neg_thres=neg_thres)
    out = jax.block_until_ready(out)
    ref = _reference(feature, label, label_type, gl_sim, pos_thres, neg_thres)
    for o, r in zip(out, ref):
        assert jnp.allclose(o, r, rtol=1e-3, atol=1e-4), (o, r)

    # Statically-elided hn branch.
    out_p = part_adacont_loss(feature, label, label_type, gl_sim,
                              pos_thres=pos_thres, neg_thres=-1.0)
    out_p = jax.block_until_ready(out_p)
    ref_p = _reference(feature, label, label_type, gl_sim, pos_thres, -1.0)
    for o, r in zip(out_p, ref_p):
        assert jnp.allclose(o, r, rtol=1e-3, atol=1e-4), (o, r)

    # Both thresholds disabled (torch default) -> all zeros, no kernel launch.
    out_z = jax.block_until_ready(part_adacont_loss(feature, label, label_type, gl_sim))
    assert all(float(v) == 0.0 for v in out_z)

    print("KERNEL_OK")
</pallas_src>

<mosaic_0001>
module attributes {stable_mosaic.version = 11 : i64} {
  func.func @_part_adacont_kernel(%arg0: i32, %arg1: memref<2x8x3xf32, #tpu.memory_space<vmem>>, %arg2: memref<2x3x8xf32, #tpu.memory_space<vmem>>, %arg3: memref<2x8x128xbf16, #tpu.memory_space<vmem>>, %arg4: memref<8x8xf32, #tpu.memory_space<vmem>>, %arg5: memref<2x1x128xf32, #tpu.memory_space<vmem>>) attributes {dimension_semantics = [#tpu.dimension_semantics<parallel>], iteration_bounds = array<i64: 2>, scalar_prefetch = 0 : i64, scratch_operands = 0 : i64, tpu.core_type = #tpu.core_type<tc>, window_params = [{transform_indices = @transform_0, window_bounds = array<i64: 2, 8, 3>}, {transform_indices = @transform_1, window_bounds = array<i64: 2, 3, 8>}, {transform_indices = @transform_2, window_bounds = array<i64: 2, 8, 128>}, {pipeline_mode = #tpu.pipeline_mode<synchronous>, transform_indices = @transform_3, window_bounds = array<i64: 8, 8>}, {transform_indices = @transform_4, window_bounds = array<i64: 2, 1, 128>}]} {
    %c0 = arith.constant 0 : index
    %c0_0 = arith.constant 0 : index
    %c0_1 = arith.constant 0 : index
    %0 = vector.load %arg1[%c0, %c0_0, %c0_1] : memref<2x8x3xf32, #tpu.memory_space<vmem>>, vector<2x8x3xf32>
    %c0_2 = arith.constant 0 : index
    %c0_3 = arith.constant 0 : index
    %c0_4 = arith.constant 0 : index
    %1 = vector.load %arg2[%c0_2, %c0_3, %c0_4] : memref<2x3x8xf32, #tpu.memory_space<vmem>>, vector<2x3x8xf32>
    %c0_5 = arith.constant 0 : index
    %c0_6 = arith.constant 0 : index
    %c0_7 = arith.constant 0 : index
    %2 = vector.load %arg3[%c0_5, %c0_6, %c0_7] : memref<2x8x128xbf16, #tpu.memory_space<vmem>>, vector<2x8x128xbf16>
    %c0_8 = arith.constant 0 : index
    %c0_9 = arith.constant 0 : index
    %3 = vector.load %arg4[%c0_8, %c0_9] : memref<8x8xf32, #tpu.memory_space<vmem>>, vector<8x8xf32>
    %4 = vector.extract_strided_slice %0 {offsets = [0, 0, 0], sizes = [2, 8, 1], strides = [1, 1, 1]} : vector<2x8x3xf32> to vector<2x8x1xf32>
    %5 = vector.extract_strided_slice %0 {offsets = [0, 0, 1], sizes = [2, 8, 1], strides = [1, 1, 1]} : vector<2x8x3xf32> to vector<2x8x1xf32>
    %6 = vector.extract_strided_slice %0 {offsets = [0, 0, 2], sizes = [2, 8, 1], strides = [1, 1, 1]} : vector<2x8x3xf32> to vector<2x8x1xf32>
    %7 = vector.extract_strided_slice %1 {offsets = [0, 0, 0], sizes = [2, 1, 8], strides = [1, 1, 1]} : vector<2x3x8xf32> to vector<2x1x8xf32>
    %8 = vector.extract_strided_slice %1 {offsets = [0, 1, 0], sizes = [2, 1, 8], strides = [1, 1, 1]} : vector<2x3x8xf32> to vector<2x1x8xf32>
    %9 = vector.extract_strided_slice %1 {offsets = [0, 2, 0], sizes = [2, 1, 8], strides = [1, 1, 1]} : vector<2x3x8xf32> to vector<2x1x8xf32>
    "tpu.trace_start"() <{level = 10 : i32, message = "pmd,pkd->pmk"}> : () -> ()
    %cst = arith.constant dense<0.000000e+00> : vector<2x8x8xf32>
    %10 = tpu.matmul %2, %2, %cst {dimension_numbers = #tpu.dot_dimension_numbers<[2], [2], [1], [1], [0, 0, 0, 1, 1, 1], [0], [0]>} : vector<2x8x128xbf16>, vector<2x8x128xbf16>, vector<2x8x8xf32> -> vector<2x8x8xf32>
    "tpu.trace_stop"() : () -> ()
    %11 = vector.broadcast %6 : vector<2x8x1xf32> to vector<2x8x8xf32>
    %12 = vector.broadcast %9 : vector<2x1x8xf32> to vector<2x8x8xf32>
    %13 = arith.addf %11, %12 : vector<2x8x8xf32>
    %cst_10 = arith.constant 2.000000e+00 : f32
    %14 = vector.broadcast %cst_10 : f32 to vector<2x8x8xf32>
    %15 = arith.mulf %14, %10 : vector<2x8x8xf32>
    %16 = arith.subf %13, %15 : vector<2x8x8xf32>
    %cst_11 = arith.constant 0.000000e+00 : f32
    %17 = vector.broadcast %cst_11 : f32 to vector<2x8x8xf32>
    %18 = arith.maximumf %16, %17 : vector<2x8x8xf32>
    %19 = math.sqrt %18 : vector<2x8x8xf32>
    %20 = vector.broadcast %4 : vector<2x8x1xf32> to vector<2x8x8xf32>
    %21 = vector.broadcast %7 : vector<2x1x8xf32> to vector<2x8x8xf32>
    %22 = arith.cmpf oeq, %20, %21 : vector<2x8x8xf32>
    %cst_12 = arith.constant dense<true> : vector<2x8x8xi1>
    %23 = arith.xori %22, %cst_12 : vector<2x8x8xi1>
    %cst_13 = arith.constant 0.000000e+00 : f32
    %24 = vector.broadcast %cst_13 : f32 to vector<2x8x1xf32>
    %25 = arith.cmpf ogt, %5, %24 : vector<2x8x1xf32>
    %26 = vector.broadcast %5 : vector<2x8x1xf32> to vector<2x8x8xf32>
    %27 = vector.broadcast %8 : vector<2x1x8xf32> to vector<2x8x8xf32>
    %28 = arith.cmpf olt, %26, %27 : vector<2x8x8xf32>
    %29 = vector.broadcast %25 : vector<2x8x1xi1> to vector<2x8x8xi1>
    %30 = arith.ori %29, %28 : vector<2x8x8xi1>
    %31 = arith.andi %23, %30 : vector<2x8x8xi1>
    %32 = arith.ori %22, %31 : vector<2x8x8xi1>
    %cst_14 = arith.constant dense<true> : vector<2x8x8xi1>
    %33 = arith.xori %32, %cst_14 : vector<2x8x8xi1>
    %cst_15 = arith.constant -1.000000e+30 : f32
    %34 = vector.broadcast %cst_15 : f32 to vector<2x8x8xf32>
    %35 = arith.select %22, %19, %34 : vector<2x8x8xi1>, vector<2x8x8xf32>
    %cst_16 = arith.constant dense<0xFF800000> : vector<2x8xf32>
    %36 = vector.multi_reduction <maximumf>, %35, %cst_16 [2] : vector<2x8x8xf32> to vector<2x8xf32>
    %37 = vector.shape_cast %36 : vector<2x8xf32> to vector<2x8x1xf32>
    %cst_17 = arith.constant 3.000000e+00 : f32
    %38 = vector.broadcast %cst_17 : f32 to vector<8x8xf32>
    %39 = arith.subf %38, %3 : vector<8x8xf32>
    %cst_18 = arith.constant 5.000000e-01 : f32
    %40 = vector.broadcast %cst_18 : f32 to vector<8x8xf32>
    %41 = arith.mulf %39, %40 : vector<8x8xf32>
    %42 = vector.shape_cast %41 : vector<8x8xf32> to vector<1x8x8xf32>
    %43 = vector.broadcast %37 : vector<2x8x1xf32> to vector<2x8x8xf32>
    %44 = vector.broadcast %42 : vector<1x8x8xf32> to vector<2x8x8xf32>
    %45 = arith.mulf %43, %44 : vector<2x8x8xf32>
    %46 = arith.subf %19, %45 : vector<2x8x8xf32>
    %cst_19 = arith.constant 2.000000e-01 : f32
    %47 = vector.broadcast %cst_19 : f32 to vector<8x8xf32>
    %48 = arith.cmpf ogt, %3, %47 : vector<8x8xf32>
    %49 = vector.shape_cast %48 : vector<8x8xi1> to vector<1x8x8xi1>
    %50 = vector.broadcast %49 : vector<1x8x8xi1> to vector<2x8x8xi1>
    %51 = arith.andi %33, %50 : vector<2x8x8xi1>
    %cst_20 = arith.constant 0.000000e+00 : f32
    %52 = vector.broadcast %cst_20 : f32 to vector<2x8x8xf32>
    %53 = arith.cmpf ogt, %46, %52 : vector<2x8x8xf32>
    %54 = arith.andi %51, %53 : vector<2x8x8xi1>
    %cst_21 = arith.constant 0.000000e+00 : f32
    %55 = vector.broadcast %cst_21 : f32 to vector<2x8x8xf32>
    %56 = arith.select %54, %46, %55 : vector<2x8x8xi1>, vector<2x8x8xf32>
    %cst_22 = arith.constant dense<0.000000e+00> : vector<2x8xf32>
    %57 = vector.multi_reduction <add>, %56, %cst_22 [2] : vector<2x8x8xf32> to vector<2x8xf32>
    %58 = vector.shape_cast %57 : vector<2x8xf32> to vector<2x8x1xf32>
    %cst_23 = arith.constant dense<0.000000e+00> : vector<2x1xf32>
    %59 = vector.multi_reduction <add>, %58, %cst_23 [1] : vector<2x8x1xf32> to vector<2x1xf32>
    %60 = vector.shape_cast %59 : vector<2x1xf32> to vector<2x1x1xf32>
    %61 = arith.extui %54 : vector<2x8x8xi1> to vector<2x8x8xi32>
    %62 = arith.sitofp %61 : vector<2x8x8xi32> to vector<2x8x8xf32>
    %cst_24 = arith.constant dense<0.000000e+00> : vector<2x8xf32>
    %63 = vector.multi_reduction <add>, %62, %cst_24 [2] : vector<2x8x8xf32> to vector<2x8xf32>
    %64 = vector.shape_cast %63 : vector<2x8xf32> to vector<2x8x1xf32>
    %cst_25 = arith.constant dense<0.000000e+00> : vector<2x1xf32>
    %65 = vector.multi_reduction <add>, %64, %cst_25 [1] : vector<2x8x1xf32> to vector<2x1xf32>
    %66 = vector.shape_cast %65 : vector<2x1xf32> to vector<2x1x1xf32>
    %cst_26 = arith.constant 1.000000e+30 : f32
    %67 = vector.broadcast %cst_26 : f32 to vector<2x8x8xf32>
    %68 = arith.select %31, %19, %67 : vector<2x8x8xi1>, vector<2x8x8xf32>
    %cst_27 = arith.constant dense<0x7F800000> : vector<2x8xf32>
    %69 = vector.multi_reduction <minimumf>, %68, %cst_27 [2] : vector<2x8x8xf32> to vector<2x8xf32>
    %70 = vector.shape_cast %69 : vector<2x8xf32> to vector<2x8x1xf32>
    %cst_28 = arith.constant 1.000000e+30 : f32
    %71 = vector.broadcast %cst_28 : f32 to vector<2x8x1xf32>
    %72 = arith.cmpf olt, %70, %71 : vector<2x8x1xf32>
    %cst_29 = arith.constant 1.000000e+00 : f32
    %73 = vector.broadcast %cst_29 : f32 to vector<8x8xf32>
    %74 = arith.subf %73, %3 : vector<8x8xf32>
    %cst_30 = arith.constant 5.000000e-01 : f32
    %75 = vector.broadcast %cst_30 : f32 to vector<8x8xf32>
    %76 = arith.mulf %74, %75 : vector<8x8xf32>
    %77 = vector.shape_cast %76 : vector<8x8xf32> to vector<1x8x8xf32>
    %78 = vector.broadcast %70 : vector<2x8x1xf32> to vector<2x8x8xf32>
    %79 = vector.broadcast %77 : vector<1x8x8xf32> to vector<2x8x8xf32>
    %80 = arith.mulf %78, %79 : vector<2x8x8xf32>
    %81 = arith.subf %80, %19 : vector<2x8x8xf32>
    %cst_31 = arith.constant 1.000000e-01 : f32
    %82 = vector.broadcast %cst_31 : f32 to vector<8x8xf32>
    %83 = arith.cmpf olt, %3, %82 : vector<8x8xf32>
    %84 = vector.shape_cast %83 : vector<8x8xi1> to vector<1x8x8xi1>
    %85 = vector.broadcast %84 : vector<1x8x8xi1> to vector<2x8x8xi1>
    %86 = arith.andi %33, %85 : vector<2x8x8xi1>
    %87 = vector.broadcast %72 : vector<2x8x1xi1> to vector<2x8x8xi1>
    %88 = arith.andi %86, %87 : vector<2x8x8xi1>
    %cst_32 = arith.constant 0.000000e+00 : f32
    %89 = vector.broadcast %cst_32 : f32 to vector<2x8x8xf32>
    %90 = arith.cmpf ogt, %81, %89 : vector<2x8x8xf32>
    %91 = arith.andi %88, %90 : vector<2x8x8xi1>
    %cst_33 = arith.constant 0.000000e+00 : f32
    %92 = vector.broadcast %cst_33 : f32 to vector<2x8x8xf32>
    %93 = arith.select %91, %81, %92 : vector<2x8x8xi1>, vector<2x8x8xf32>
    %cst_34 = arith.constant dense<0.000000e+00> : vector<2x8xf32>
    %94 = vector.multi_reduction <add>, %93, %cst_34 [2] : vector<2x8x8xf32> to vector<2x8xf32>
    %95 = vector.shape_cast %94 : vector<2x8xf32> to vector<2x8x1xf32>
    %cst_35 = arith.constant dense<0.000000e+00> : vector<2x1xf32>
    %96 = vector.multi_reduction <add>, %95, %cst_35 [1] : vector<2x8x1xf32> to vector<2x1xf32>
    %97 = vector.shape_cast %96 : vector<2x1xf32> to vector<2x1x1xf32>
    %98 = arith.extui %91 : vector<2x8x8xi1> to vector<2x8x8xi32>
    %99 = arith.sitofp %98 : vector<2x8x8xi32> to vector<2x8x8xf32>
    %cst_36 = arith.constant dense<0.000000e+00> : vector<2x8xf32>
    %100 = vector.multi_reduction <add>, %99, %cst_36 [2] : vector<2x8x8xf32> to vector<2x8xf32>
    %101 = vector.shape_cast %100 : vector<2x8xf32> to vector<2x8x1xf32>
    %cst_37 = arith.constant dense<0.000000e+00> : vector<2x1xf32>
    %102 = vector.multi_reduction <add>, %101, %cst_37 [1] : vector<2x8x1xf32> to vector<2x1xf32>
    %103 = vector.shape_cast %102 : vector<2x1xf32> to vector<2x1x1xf32>
    %104 = tpu.iota {dimensions = array<i32: 2>} : vector<2x1x128xi32>
    %c0_i32 = arith.constant 0 : i32
    %105 = vector.broadcast %c0_i32 : i32 to vector<2x1x128xi32>
    %106 = arith.cmpi eq, %104, %105 : vector<2x1x128xi32>
    %cst_38 = arith.constant 0.000000e+00 : f32
    %107 = vector.shape_cast %60 : vector<2x1x1xf32> to vector<2x1x1xf32>
    %108 = vector.broadcast %107 : vector<2x1x1xf32> to vector<2x1x128xf32>
    %109 = vector.broadcast %cst_38 : f32 to vector<2x1x128xf32>
    %110 = arith.select %106, %108, %109 : vector<2x1x128xi1>, vector<2x1x128xf32>
    %c1_i32 = arith.constant 1 : i32
    %111 = vector.broadcast %c1_i32 : i32 to vector<2x1x128xi32>
    %112 = arith.cmpi eq, %104, %111 : vector<2x1x128xi32>
    %cst_39 = arith.constant 0.000000e+00 : f32
    %113 = vector.shape_cast %66 : vector<2x1x1xf32> to vector<2x1x1xf32>
    %114 = vector.broadcast %113 : vector<2x1x1xf32> to vector<2x1x128xf32>
    %115 = vector.broadcast %cst_39 : f32 to vector<2x1x128xf32>
    %116 = arith.select %112, %114, %115 : vector<2x1x128xi1>, vector<2x1x128xf32>
    %117 = arith.addf %110, %116 : vector<2x1x128xf32>
    %c2_i32 = arith.constant 2 : i32
    %118 = vector.broadcast %c2_i32 : i32 to vector<2x1x128xi32>
    %119 = arith.cmpi eq, %104, %118 : vector<2x1x128xi32>
    %cst_40 = arith.constant 0.000000e+00 : f32
    %120 = vector.shape_cast %97 : vector<2x1x1xf32> to vector<2x1x1xf32>
    %121 = vector.broadcast %120 : vector<2x1x1xf32> to vector<2x1x128xf32>
    %122 = vector.broadcast %cst_40 : f32 to vector<2x1x128xf32>
    %123 = arith.select %119, %121, %122 : vector<2x1x128xi1>, vector<2x1x128xf32>
    %124 = arith.addf %117, %123 : vector<2x1x128xf32>
    %c3_i32 = arith.constant 3 : i32
    %125 = vector.broadcast %c3_i32 : i32 to vector<2x1x128xi32>
    %126 = arith.cmpi eq, %104, %125 : vector<2x1x128xi32>
    %cst_41 = arith.constant 0.000000e+00 : f32
    %127 = vector.shape_cast %103 : vector<2x1x1xf32> to vector<2x1x1xf32>
    %128 = vector.broadcast %127 : vector<2x1x1xf32> to vector<2x1x128xf32>
    %129 = vector.broadcast %cst_41 : f32 to vector<2x1x128xf32>
    %130 = arith.select %126, %128, %129 : vector<2x1x128xi1>, vector<2x1x128xf32>
    %131 = arith.addf %124, %130 : vector<2x1x128xf32>
    %c0_42 = arith.constant 0 : index
    %c0_43 = arith.constant 0 : index
    %c0_44 = arith.constant 0 : index
    %132 = vector.load %arg5[%c0_42, %c0_43, %c0_44] : memref<2x1x128xf32, #tpu.memory_space<vmem>>, vector<2x1x128xf32>
    tpu.vector_store %arg5[%c0_42, %c0_43, %c0_44], %131 {strides = array<i32>} : memref<2x1x128xf32, #tpu.memory_space<vmem>>, vector<2x1x128xf32>,
    return
  }
  func.func @transform_0(%arg0: i32) -> (i32, i32, i32) {
    %c0_i32 = arith.constant 0 : i32
    %c0_i32_0 = arith.constant 0 : i32
    %c0_i32_1 = arith.constant 0 : i32
    return %arg0, %c0_i32, %c0_i32_0 : i32, i32, i32
  }
  func.func @transform_1(%arg0: i32) -> (i32, i32, i32) {
    %c0_i32 = arith.constant 0 : i32
    %c0_i32_0 = arith.constant 0 : i32
    %c0_i32_1 = arith.constant 0 : i32
    return %arg0, %c0_i32, %c0_i32_0 : i32, i32, i32
  }
  func.func @transform_2(%arg0: i32) -> (i32, i32, i32) {
    %c0_i32 = arith.constant 0 : i32
    %c0_i32_0 = arith.constant 0 : i32
    %c0_i32_1 = arith.constant 0 : i32
    return %arg0, %c0_i32, %c0_i32_0 : i32, i32, i32
  }
  func.func @transform_3(%arg0: i32) -> (i32, i32) {
    %c0_i32 = arith.constant 0 : i32
    %c0_i32_0 = arith.constant 0 : i32
    %c0_i32_1 = arith.constant 0 : i32
    return %c0_i32, %c0_i32_0 : i32, i32
  }
  func.func @transform_4(%arg0: i32) -> (i32, i32, i32) {
    %c0_i32 = arith.constant 0 : i32
    %c0_i32_0 = arith.constant 0 : i32
    %c0_i32_1 = arith.constant 0 : i32
    return %arg0, %c0_i32, %c0_i32_0 : i32, i32, i32
  }
}

</mosaic_0001>

<llo_original>
// kernel: part_adacont_loss.1
$region0: #{part_adacont_loss.1}
  #allocation0 [shape = 'u32[]', space=smem, size = 0x4, offset = 0x4, fixed_abs, tag = 'smem constant byte address 0x4 - core index']
  #allocation1 [shape = 'u32[144,128]{1,0:T(1,128)}', space=vmem, size = 0x12000, scoped, tag = 'internal scratch']
  %s0 = inlined_call_operand.vmem [shape: f32[4,8,3], index: 0, kind: input, shape index: {}]
  %s1 = inlined_call_operand.vmem [shape: f32[4,3,8], index: 1, kind: input, shape index: {}]
  %s2 = inlined_call_operand.vmem [shape: bf16[4,8,128], index: 2, kind: input, shape index: {}]
  %s3 = inlined_call_operand.vmem [shape: f32[8,8], index: 3, kind: input, shape index: {}]
  %s4 = inlined_call_operand.vmem [shape: f32[4,1,128], index: 4, kind: output, shape index: {}]
  %s5 = sld [smem:[#allocation0]]
  $region49: #{part_adacont_loss.1} parent=0
    _
  %s7 = ssub.s32 1, %s5
  %s8 = scalar_select 0, %s7, %s5
  loop: start=0, step=1, limit=4
  $region2: #{part_adacont_loss.1} parent=0 // loop_pre_header
    _
  $region3: #{part_adacont_loss.1} parent=0 // loop_header
    %s10 = sphi 0, %s14
    %p11 = scmp.ge.s32.totalorder %s10, 4
    %s20 = sphi 0, %s22
    %s23 = sphi 0, %s20
    %s24 = sphi 0, %s23
    %s40 = sphi 0, %s24
    %s46 = sphi 0, %s48
    %s49 = sphi 0, %s46
    %s50 = sphi 0, %s49
    %s66 = sphi 0, %s50
    %s72 = sphi 0, %s74
    %s75 = sphi 0, %s72
    %s76 = sphi 0, %s75
    %s92 = sphi 0, %s76
    %s96 = sphi 0, %s96
    %s98 = sphi 0, %s96
    %s99 = sphi 0, %s98
    %s113 = sphi 0, %s99
    %s119 = sphi 0, %s121
    %s122 = sphi 0, %s119
    %s123 = sphi 0, %s122
    %s139 = sphi 0, %s123
  $region4: #{part_adacont_loss.1} parent=0 // loop_header_branch
    %13 = sbr.rel (%p11) target = $region8
  $region5: #{part_adacont_loss.1} parent=0 // loop_body
    %s15 = ssub.s32 %s10, 1
    %s16 = ssub.s32 %s10, 2
    %s17 = sadd.s32 %s10, 1
    %s18 = ssub.s32 %s10, %s17
    %p19 = scmp.eq.s32.totalorder %s18, 0
    %s21 = sadd.s32 %s20, 1
    %s22 = scalar_select %p19, %s20, %s21
    %p25 = pneg %p19
    %p26 = scmp.eq.s32.totalorder %s10, 1
    %p27 = por %p25, %p26
    %p28 = scmp.ne.s32.totalorder %s20, %s23
    %p29 = scmp.eq.s32.totalorder %s10, 0
    %p30 = por %p28, %p29
    %p31 = scmp.ne.s32.totalorder %s20, %s23
    %p32 = scmp.eq.s32.totalorder %s15, 1
    %p33 = por %p31, %p32
    %p34 = scmp.ne.s32.totalorder %s23, %s24
    %p35 = scmp.eq.s32.totalorder %s15, 0
    %p36 = por %p34, %p35
    %p37 = scmp.ne.s32.totalorder %s23, %s24
    %p38 = scmp.eq.s32.totalorder %s16, 1
    %p39 = por %p37, %p38
    %p41 = scmp.ne.s32.totalorder %s24, %s40
    %p42 = scmp.eq.s32.totalorder %s16, 0
    %p43 = por %p41, %p42
    %s44 = ssub.s32 %s10, %s17
    %p45 = scmp.eq.s32.totalorder %s44, 0
    %s47 = sadd.s32 %s46, 1
    %s48 = scalar_select %p45, %s46, %s47
    %p51 = pneg %p45
    %p52 = scmp.eq.s32.totalorder %s10, 1
    %p53 = por %p51, %p52
    %p54 = scmp.ne.s32.totalorder %s46, %s49
    %p55 = scmp.eq.s32.totalorder %s10, 0
    %p56 = por %p54, %p55
    %p57 = scmp.ne.s32.totalorder %s46, %s49
    %p58 = scmp.eq.s32.totalorder %s15, 1
    %p59 = por %p57, %p58
    %p60 = scmp.ne.s32.totalorder %s49, %s50
    %p61 = scmp.eq.s32.totalorder %s15, 0
    %p62 = por %p60, %p61
    %p63 = scmp.ne.s32.totalorder %s49, %s50
    %p64 = scmp.eq.s32.totalorder %s16, 1
    %p65 = por %p63, %p64
    %p67 = scmp.ne.s32.totalorder %s50, %s66
    %p68 = scmp.eq.s32.totalorder %s16, 0
    %p69 = por %p67, %p68
    %s70 = ssub.s32 %s10, %s17
    %p71 = scmp.eq.s32.totalorder %s70, 0
    %s73 = sadd.s32 %s72, 1
    %s74 = scalar_select %p71, %s72, %s73
    %p77 = pneg %p71
    %p78 = scmp.eq.s32.totalorder %s10, 1
    %p79 = por %p77, %p78
    %p80 = scmp.ne.s32.totalorder %s72, %s75
    %p81 = scmp.eq.s32.totalorder %s10, 0
    %p82 = por %p80, %p81
    %p83 = scmp.ne.s32.totalorder %s72, %s75
    %p84 = scmp.eq.s32.totalorder %s15, 1
    %p85 = por %p83, %p84
    %p86 = scmp.ne.s32.totalorder %s75, %s76
    %p87 = scmp.eq.s32.totalorder %s15, 0
    %p88 = por %p86, %p87
    %p89 = scmp.ne.s32.totalorder %s75, %s76
    %p90 = scmp.eq.s32.totalorder %s16, 1
    %p91 = por %p89, %p90
    %p93 = scmp.ne.s32.totalorder %s76, %s92
    %p94 = scmp.eq.s32.totalorder %s16, 0
    %p95 = por %p93, %p94
    %s97 = sadd.s32 %s96, 1
    %p100 = scmp.eq.s32.totalorder %s10, 1
    %p101 = scmp.ne.s32.totalorder %s96, %s98
    %p102 = scmp.eq.s32.totalorder %s10, 0
    %p103 = por %p101, %p102
    %p104 = scmp.ne.s32.totalorder %s96, %s98
    %p105 = scmp.eq.s32.totalorder %s15, 1
    %p106 = por %p104, %p105
    %p107 = scmp.ne.s32.totalorder %s98, %s99
    %p108 = scmp.eq.s32.totalorder %s15, 0
    %p109 = por %p107, %p108
    %p110 = scmp.ne.s32.totalorder %s98, %s99
    %p111 = scmp.eq.s32.totalorder %s16, 1
    %p112 = por %p110, %p111
    %p114 = scmp.ne.s32.totalorder %s99, %s113
    %p115 = scmp.eq.s32.totalorder %s16, 0
    %p116 = por %p114, %p115
    %s117 = ssub.s32 %s10, %s17
    %p118 = scmp.eq.s32.totalorder %s117, 0
    %s120 = sadd.s32 %s119, 1
    %s121 = scalar_select %p118, %s119, %s120
    %p124 = pneg %p118
    %p125 = scmp.eq.s32.totalorder %s10, 1
    %p126 = por %p124, %p125
    %p127 = scmp.ne.s32.totalorder %s119, %s122
    %p128 = scmp.eq.s32.totalorder %s10, 0
    %p129 = por %p127, %p128
    %p130 = scmp.ne.s32.totalorder %s119, %s122
    %p131 = scmp.eq.s32.totalorder %s15, 1
    %p132 = por %p130, %p131
    %p133 = scmp.ne.s32.totalorder %s122, %s123
    %p134 = scmp.eq.s32.totalorder %s15, 0
    %p135 = por %p133, %p134
    %p136 = scmp.ne.s32.totalorder %s122, %s123
    %p137 = scmp.eq.s32.totalorder %s16, 1
    %p138 = por %p136, %p137
    %p140 = scmp.ne.s32.totalorder %s123, %s139
    %p141 = scmp.eq.s32.totalorder %s16, 0
    %p142 = por %p140, %p141
    %p143 = scmp.le.s32.totalorder 1, %s10
    %p144 = scmp.lt.s32.totalorder %s10, 3
    %p145 = pnand %p143, %p144
    %p146 = pneg %p145
    // Predicated region
    $region9: #{part_adacont_loss.1} parent=5 // pred_check
      _
    $region10: #{part_adacont_loss.1} parent=5 // pred_check_branch
      %148 = sbr.rel (%p145) target = $region12
    $region11: #{part_adacont_loss.1} parent=5 // pred_region
      %s149 = ssub.s32 %s10, 1
      // Predicated region
      $region13: #{part_adacont_loss.1} parent=11 // pred_check
        %p150 = pneg %p109
      $region14: #{part_adacont_loss.1} parent=11 // pred_check_branch
        %152 = sbr.rel (%p150) target = $region16
      $region15: #{part_adacont_loss.1} parent=11 // pred_region
        _
      $region16: #{part_adacont_loss.1} parent=11 // pred_fallthru
        _
    $region12: #{part_adacont_loss.1} parent=5 // pred_fallthru
      _
    %p153 = scmp.lt.s32.totalorder %s10, 2
    // Predicated region
    $region17: #{part_adacont_loss.1} parent=5 // pred_check
      %p154 = pneg %p153
    $region18: #{part_adacont_loss.1} parent=5 // pred_check_branch
      %156 = sbr.rel (%p154) target = $region20
    $region19: #{part_adacont_loss.1} parent=5 // pred_region
      // Predicated region
      $region21: #{part_adacont_loss.1} parent=19 // pred_check
        %p157 = pneg %p30
      $region22: #{part_adacont_loss.1} parent=19 // pred_check_branch
        %159 = sbr.rel (%p157) target = $region24
      $region23: #{part_adacont_loss.1} parent=19 // pred_region
        %s160 = smul.u32 2, %s10
        %p161 = scmp.lt.s32.totalorder %s160, 3
        %s162 = scalar_select %p161, %s160, 3
        %s163 = smul.addr %s162, 8
        %s164 = scalar_lea.vmem %s0, %s163
        %s165 = smul.u32 2, %s10
      $region24: #{part_adacont_loss.1} parent=19 // pred_fallthru
        _
      // Predicated region
      $region25: #{part_adacont_loss.1} parent=19 // pred_check
        %p166 = pneg %p56
      $region26: #{part_adacont_loss.1} parent=19 // pred_check_branch
        %168 = sbr.rel (%p166) target = $region28
      $region27: #{part_adacont_loss.1} parent=19 // pred_region
        %s169 = smul.u32 2, %s10
        %p170 = scmp.lt.s32.totalorder %s169, 3
        %s171 = scalar_select %p170, %s169, 3
        %s172 = smul.addr %s171, 4
        %s173 = scalar_lea.vmem %s1, %s172
        %s174 = smul.u32 2, %s10
      $region28: #{part_adacont_loss.1} parent=19 // pred_fallthru
        _
      // Predicated region
      $region29: #{part_adacont_loss.1} parent=19 // pred_check
        %p175 = pneg %p82
      $region30: #{part_adacont_loss.1} parent=19 // pred_check_branch
        %177 = sbr.rel (%p175) target = $region32
      $region31: #{part_adacont_loss.1} parent=19 // pred_region
        %s178 = smul.u32 2, %s10
        %p179 = scmp.lt.s32.totalorder %s178, 3
        %s180 = scalar_select %p179, %s178, 3
        %s181 = smul.addr %s180, 4
        %s182 = scalar_lea.vmem %s2, %s181
        %s183 = smul.u32 2, %s10
      $region32: #{part_adacont_loss.1} parent=19 // pred_fallthru
        _
    $region20: #{part_adacont_loss.1} parent=5 // pred_fallthru
      _
    %p184 = scmp.le.s32.totalorder 1, %s10
    %p185 = scmp.lt.s32.totalorder %s10, 3
    %p186 = pnand %p184, %p185
    %p187 = pneg %p186
    // Predicated region
    $region33: #{part_adacont_loss.1} parent=5 // pred_check
      _
    $region34: #{part_adacont_loss.1} parent=5 // pred_check_branch
      %189 = sbr.rel (%p186) target = $region36
    $region35: #{part_adacont_loss.1} parent=5 // pred_region
      %s190 = ssub.s32 %s10, 1
      %s191 = smul.u32 2, %s15
      %p192 = scmp.lt.s32.totalorder %s191, 3
      %s193 = scalar_select %p192, %s191, 3
      %s194 = smul.addr %s193, 8
      %s195 = scalar_lea.vmem %s0, %s194
      %p196 = pneg %p36
      %p197 = pneg %p33
      %s198 = smul.u32 2, %s15
      %p199 = scmp.lt.s32.totalorder %s198, 3
      %s200 = scalar_select %p199, %s198, 3
      %s201 = smul.addr %s200, 4
      %s202 = scalar_lea.vmem %s1, %s201
      %p203 = pneg %p62
      %p204 = pneg %p59
      %s205 = smul.u32 2, %s15
      %p206 = scmp.lt.s32.totalorder %s205, 3
      %s207 = scalar_select %p206, %s205, 3
      %s208 = smul.addr %s207, 4
      %s209 = scalar_lea.vmem %s2, %s208
      %p210 = pneg %p88
      %p211 = pneg %p85
      %p212 = pneg %p109
      %p213 = pneg %p106
      %p214 = pneg %p135
      %p215 = pneg %p132
      %s216 = smul.u32 2, %s15
      %p217 = scmp.lt.s32.totalorder %s216, 3
      %s218 = scalar_select %p217, %s216, 3
      %s219 = scalar_lea.vmem %s4, %s218
      %s220 = smul.u32 2, %s15
      %p221 = scmp.lt.s32.totalorder %s220, 3
      %s222 = scalar_select %p221, %s220, 3
      %s223 = smul.addr %s222, 8
      %s224 = scalar_lea.vmem %s0, %s223
      %s225 = smul.u32 2, %s15
      %s226 = smul.u32 2, %s15
      %p227 = scmp.lt.s32.totalorder %s226, 3
      %s228 = scalar_select %p227, %s226, 3
      %s229 = smul.addr %s228, 4
      %s230 = scalar_lea.vmem %s1, %s229
      %s231 = smul.u32 2, %s15
      %s232 = smul.u32 2, %s15
      %p233 = scmp.lt.s32.totalorder %s232, 3
      %s234 = scalar_select %p233, %s232, 3
      %s235 = smul.addr %s234, 4
      %s236 = scalar_lea.vmem %s2, %s235
      %s237 = smul.u32 2, %s15
      %s238 = smul.u32 2, %s15
      %p239 = scmp.lt.s32.totalorder %s238, 3
      %s240 = scalar_select %p239, %s238, 3
      %s241 = scalar_lea.vmem %s4, %s240
      %s242 = smul.u32 2, %s15
      %v244 = vld [vmem:[%s224] sm:$0xff]
      %v245 = vld [vmem:[%s224 + $0x8] sm:$0xff]
      %v246 = vld [vmem:[%s230] sm:$0x7]
      %v247 = vld [vmem:[%s230 + $0x4] sm:$0x7]
      %v248 = vld [vmem:[%s236] sm:$0xf]
      %v249 = vld [vmem:[%s236 + $0x4] sm:$0xf]
      %v250 = vld [vmem:[%s3] sm:$0xff]
      %251 = vmatprep.subr.bf16.mxu0 0
      %252 = vmatpush1.bf16.xpose.msra.mxu0 0
      %253 = vmatprep.subr.bf16.mxu0 0
      %254 = vmatpush1.bf16.xpose.msra.mxu0 0
      %255 = vmatprep.subr.bf16.mxu0 0
      %256 = vmatpush1.bf16.xpose.msra.mxu0 0
      %257 = vmatprep.subr.bf16.mxu0 0
      %258 = vmatpush1.bf16.xpose.msra.mxu0 0
      %259 = vmatprep.subr.bf16.mxu0 0
      %260 = vmatpush1.bf16.xpose.msra.mxu0 0
      %261 = vmatprep.subr.bf16.mxu0 0
      %262 = vmatpush1.bf16.xpose.msra.mxu0 0
      %263 = vmatprep.subr.bf16.mxu0 0
      %264 = vmatpush1.bf16.xpose.msra.mxu0 0
      %265 = vmatprep.subr.bf16.mxu0 0
      %266 = vmatpush1.bf16.xpose.msra.mxu0 %v248
      %267 = vmatprep.subr.bf16.mxu0 0
      %268 = vmatpush2.bf16.xpose.msra.mxu0 0
      %269 = vmatprep.subr.bf16.mxu0 0
      %270 = vmatpush2.bf16.xpose.msra.mxu0 0
      %271 = vmatprep.subr.bf16.mxu0 0
      %272 = vmatpush2.bf16.xpose.msra.mxu0 0
      %273 = vmatprep.subr.bf16.mxu0 0
      %274 = vmatpush2.bf16.xpose.msra.mxu0 0
      %275 = vmatprep.subr.bf16.mxu0 0
      %276 = vmatpush2.bf16.xpose.msra.mxu0 0
      %277 = vmatprep.subr.bf16.mxu0 0
      %278 = vmatpush2.bf16.xpose.msra.mxu0 0
      %279 = vmatprep.subr.bf16.mxu0 0
      %280 = vmatpush2.bf16.xpose.msra.mxu0 0
      %281 = vmatprep.subr.bf16.mxu0 0
      %282 = vmatpush2.bf16.xpose.msra.mxu0 0
      %283 = vmatprep.mubr.bf16.mxu0 0
      %284 = vmatmul.mubr.bf16.gmra.mxu0 %v248
      %v285 = vpop.f32.mrf.mxu0
      %v286 = vadd.f32 0.0, %v285
      %v287 = vpop.f32.mrf.mxu0
      %v288 = vpop.f32.mrf.mxu0
      %v289 = vpop.f32.mrf.mxu0
      %290 = vdwg.mxu0
      %291 = vmatprep.subr.bf16.mxu0 0
      %292 = vmatpush1.bf16.xpose.msra.mxu0 0
      %293 = vmatprep.subr.bf16.mxu0 0
      %294 = vmatpush1.bf16.xpose.msra.mxu0 0
      %295 = vmatprep.subr.bf16.mxu0 0
      %296 = vmatpush1.bf16.xpose.msra.mxu0 0
      %297 = vmatprep.subr.bf16.mxu0 0
      %298 = vmatpush1.bf16.xpose.msra.mxu0 0
      %299 = vmatprep.subr.bf16.mxu0 0
      %300 = vmatpush1.bf16.xpose.msra.mxu0 0
      %301 = vmatprep.subr.bf16.mxu0 0
      %302 = vmatpush1.bf16.xpose.msra.mxu0 0
      %303 = vmatprep.subr.bf16.mxu0 0
      %304 = vmatpush1.bf16.xpose.msra.mxu0 0
      %305 = vmatprep.subr.bf16.mxu0 0
      %306 = vmatpush1.bf16.xpose.msra.mxu0 %v249
      %307 = vmatprep.subr.bf16.mxu0 0
      %308 = vmatpush2.bf16.xpose.msra.mxu0 0
      %309 = vmatprep.subr.bf16.mxu0 0
      %310 = vmatpush2.bf16.xpose.msra.mxu0 0
      %311 = vmatprep.subr.bf16.mxu0 0
      %312 = vmatpush2.bf16.xpose.msra.mxu0 0
      %313 = vmatprep.subr.bf16.mxu0 0
      %314 = vmatpush2.bf16.xpose.msra.mxu0 0
      %315 = vmatprep.subr.bf16.mxu0 0
      %316 = vmatpush2.bf16.xpose.msra.mxu0 0
      %317 = vmatprep.subr.bf16.mxu0 0
      %318 = vmatpush2.bf16.xpose.msra.mxu0 0
      %319 = vmatprep.subr.bf16.mxu0 0
      %320 = vmatpush2.bf16.xpose.msra.mxu0 0
      %321 = vmatprep.subr.bf16.mxu0 0
      %322 = vmatpush2.bf16.xpose.msra.mxu0 0
      %323 = vmatprep.mubr.bf16.mxu0 0
      %324 = vmatmul.mubr.bf16.gmra.mxu0 %v249
      %v325 = vpop.f32.mrf.mxu0
      %v326 = vadd.f32 0.0, %v325
      %v327 = vpop.f32.mrf.mxu0
      %v328 = vpop.f32.mrf.mxu0
      %v329 = vpop.f32.mrf.mxu0
      %330 = vdwg.mxu0
      %332 = vset.pattern.permute.xlu0 2
      %333 = vperm.xlu0 %332, %v244
      %v334 = vpop.permute.xlu0 %333
      %337 = vset.pattern.permute.xlu0 2
      %338 = vperm.xlu0 %337, %v245
      %v339 = vpop.permute.xlu0 %338
      %v341 = vlaneseq
      %v342 = vshrl.u32 %v341, 7
      %v343 = vsub.s32 2, %v342
      %v344 = vrot.slane %v246, %v343
      %v345 = vlaneseq
      %v346 = vshrl.u32 %v345, 7
      %v347 = vsub.s32 2, %v346
      %v348 = vrot.slane %v247, %v347
      %v349 = vadd.f32 %v334, %v344
      %v350 = vadd.f32 %v339, %v348
      %v351 = vmul.f32 %v286, 2.0
      %v352 = vmul.f32 %v326, 2.0
      %v353 = vsub.f32 %v349, %v351
      %v354 = vsub.f32 %v350, %v352
      %v355 = vmax.f32 %v353, 0.0
      %v356 = vmax.f32 %v354, 0.0
      %v357 = vrsqrt.pop %v355
      %v358 = vmul.f32 %v355, %v357
      %vm359 = vcmp.eq.f32.partialorder %v355, inf
      %v360 = vsel %vm359, %v355, %v358
      %vm361 = vcmp.eq.f32.partialorder %v355, 0.0
      %v362 = vand.u32 %v355, 2147483648
      %v363 = vsel %vm361, %v362, %v360
      %v364 = vrsqrt.pop %v356
      %v365 = vmul.f32 %v356, %v364
      %vm366 = vcmp.eq.f32.partialorder %v356, inf
      %v367 = vsel %vm366, %v356, %v365
      %vm368 = vcmp.eq.f32.partialorder %v356, 0.0
      %v369 = vand.u32 %v356, 2147483648
      %v370 = vsel %vm368, %v369, %v367
      %371 = vset.pattern.permute.xlu0 0
      %372 = vperm.xlu0 %371, %v244
      %v373 = vpop.permute.xlu0 %372
      %375 = vset.pattern.permute.xlu0 0
      %376 = vperm.xlu0 %375, %v245
      %v377 = vpop.permute.xlu0 %376
      %v379 = vlaneseq
      %v380 = vshrl.u32 %v379, 7
      %v381 = vsub.s32 0, %v380
      %v382 = vrot.slane %v246, %v381
      %v383 = vlaneseq
      %v384 = vshrl.u32 %v383, 7
      %v385 = vsub.s32 0, %v384
      %v386 = vrot.slane %v247, %v385
      %vm387 = vcmp.eq.f32.partialorder %v373, %v382
      %vm388 = vcmp.eq.f32.partialorder %v377, %v386
      %vm389 = vmxor %vm387, 1
      %vm390 = vmxor %vm388, 1
      %vm391 = vcmp.gt.f32.partialorder %v244, 0.0
      %vm392 = vcmp.gt.f32.partialorder %v245, 0.0
      %393 = vset.pattern.permute.xlu0 1
      %394 = vperm.xlu0 %393, %v244
      %v395 = vpop.permute.xlu0 %394
      %397 = vset.pattern.permute.xlu0 1
      %398 = vperm.xlu0 %397, %v245
      %v399 = vpop.permute.xlu0 %398
      %v401 = vlaneseq
      %v402 = vshrl.u32 %v401, 7
      %v403 = vsub.s32 1, %v402
      %v404 = vrot.slane %v246, %v403
      %v405 = vlaneseq
      %v406 = vshrl.u32 %v405, 7
      %v407 = vsub.s32 1, %v406
      %v408 = vrot.slane %v247, %v407
      %vm409 = vcmp.lt.f32.partialorder %v395, %v404
      %vm410 = vcmp.lt.f32.partialorder %v399, %v408
      %v411 = vsel %vm391, 1, 0
      %v412 = vsel %vm392, 1, 0
      %413 = vset.pattern.permute.xlu0 1
      %414 = vperm.xlu0 %413, %v411
      %v415 = vpop.permute.xlu0 %414
      %416 = vset.pattern.permute.xlu0 1
      %417 = vperm.xlu0 %416, %v412
      %v418 = vpop.permute.xlu0 %417
      %vm419 = vcmp.eq.s32.totalorder %v415, 1
      %vm420 = vcmp.eq.s32.totalorder %v418, 1
      %vm421 = vmor %vm419, %vm409
      %vm422 = vmor %vm420, %vm410
      %vm423 = vmand %vm389, %vm421
      %vm424 = vmand %vm390, %vm422
      %vm425 = vmor %vm387, %vm423
      %vm426 = vmor %vm388, %vm424
      %vm427 = vmxor %vm425, 1
      %vm428 = vmxor %vm426, 1
      %v429 = vsel %vm387, %v363, -1e+30
      %v430 = vsel %vm388, %v370, -1e+30
      %vm431 = vcmask 64512
      %v432 = vsel %vm431, %v429, -inf
      %433 = vmax.xlane.f32.xlu0 %v432
      %v434 = vpop.xlane.xlu0 %433
      %v435 = vsel %vm431, %v430, -inf
      %436 = vmax.xlane.f32.xlu0 %v435
      %v437 = vpop.xlane.xlu0 %436
      %v438 = vsub.f32 3.0, %v250
      %v439 = vmul.f32 %v438, 0.5
      %v440 = vmul.f32 %v434, %v439
      %v441 = vmul.f32 %v437, %v439
      %v442 = vsub.f32 %v363, %v440
      %v443 = vsub.f32 %v370, %v441
      %vm444 = vcmp.gt.f32.partialorder %v250, 0.2
      %v445 = vsel %vm444, 1, 0
      %vm446 = vcmp.eq.s32.totalorder %v445, 1
      %vm447 = vmand %vm427, %vm446
      %vm448 = vmand %vm428, %vm446
      %vm449 = vcmp.gt.f32.partialorder %v442, 0.0
      %vm450 = vcmp.gt.f32.partialorder %v443, 0.0
      %vm451 = vmand %vm447, %vm449
      %vm452 = vmand %vm448, %vm450
      %v453 = vsel %vm451, %v442, 0.0
      %v454 = vsel %vm452, %v443, 0.0
      %v455 = vsel %vm431, %v453, 0.0
      %456 = vadd.xlane.f32.xlu0 %v455
      %v457 = vpop.xlane.xlu0 %456
      %v458 = vsel %vm431, %v454, 0.0
      %459 = vadd.xlane.f32.xlu0 %v458
      %v460 = vpop.xlane.xlu0 %459
      %v461 = vrot.slane %v457, 4
      %v462 = vadd.f32 %v457, %v461
      %v463 = vrot.slane %v462, 2
      %v464 = vadd.f32 %v462, %v463
      %v465 = vrot.slane %v464, 1
      %v466 = vadd.f32 %v464, %v465
      %v467 = vrot.slane %v460, 4
      %v468 = vadd.f32 %v460, %v467
      %v469 = vrot.slane %v468, 2
      %v470 = vadd.f32 %v468, %v469
      %v471 = vrot.slane %v470, 1
      %v472 = vadd.f32 %v470, %v471
      %v473 = vsel %vm451, 1, 0
      %v474 = vsel %vm452, 1, 0
      %v475 = vcvt.s32.f32 %v473
      %v476 = vcvt.s32.f32 %v474
      %v477 = vsel %vm431, %v475, 0.0
      %478 = vadd.xlane.f32.xlu0 %v477
      %v479 = vpop.xlane.xlu0 %478
      %v480 = vsel %vm431, %v476, 0.0
      %481 = vadd.xlane.f32.xlu0 %v480
      %v482 = vpop.xlane.xlu0 %481
      %v483 = vrot.slane %v479, 4
      %v484 = vadd.f32 %v479, %v483
      %v485 = vrot.slane %v484, 2
      %v486 = vadd.f32 %v484, %v485
      %v487 = vrot.slane %v486, 1
      %v488 = vadd.f32 %v486, %v487
      %v489 = vrot.slane %v482, 4
      %v490 = vadd.f32 %v482, %v489
      %v491 = vrot.slane %v490, 2
      %v492 = vadd.f32 %v490, %v491
      %v493 = vrot.slane %v492, 1
      %v494 = vadd.f32 %v492, %v493
      %v495 = vsel %vm423, %v363, 1e+30
      %v496 = vsel %vm424, %v370, 1e+30
      %v497 = vsel %vm431, %v495, inf
      %498 = vmin.xlane.f32.xlu0 %v497
      %v499 = vpop.xlane.xlu0 %498
      %v500 = vsel %vm431, %v496, inf
      %501 = vmin.xlane.f32.xlu0 %v500
      %v502 = vpop.xlane.xlu0 %501
      %vm503 = vcmp.lt.f32.partialorder %v499, 1e+30
      %vm504 = vcmp.lt.f32.partialorder %v502, 1e+30
      %v505 = vsub.f32 1.0, %v250
      %v506 = vmul.f32 %v505, 0.5
      %v507 = vmul.f32 %v499, %v506
      %v508 = vmul.f32 %v502, %v506
      %v509 = vsub.f32 %v507, %v363
      %v510 = vsub.f32 %v508, %v370
      %vm511 = vcmp.lt.f32.partialorder %v250, 0.1
      %v512 = vsel %vm511, 1, 0
      %vm513 = vcmp.eq.s32.totalorder %v512, 1
      %vm514 = vmand %vm427, %vm513
      %vm515 = vmand %vm428, %vm513
      %v516 = vsel %vm503, 1, 0
      %v517 = vsel %vm504, 1, 0
      %vm518 = vcmp.eq.s32.totalorder %v516, 1
      %vm519 = vcmp.eq.s32.totalorder %v517, 1
      %vm520 = vmand %vm514, %vm518
      %vm521 = vmand %vm515, %vm519
      %vm522 = vcmp.gt.f32.partialorder %v509, 0.0
      %vm523 = vcmp.gt.f32.partialorder %v510, 0.0
      %vm524 = vmand %vm520, %vm522
      %vm525 = vmand %vm521, %vm523
      %v526 = vsel %vm524, %v509, 0.0
      %v527 = vsel %vm525, %v510, 0.0
      %v528 = vsel %vm431, %v526, 0.0
      %529 = vadd.xlane.f32.xlu0 %v528
      %v530 = vpop.xlane.xlu0 %529
      %v531 = vsel %vm431, %v527, 0.0
      %532 = vadd.xlane.f32.xlu0 %v531
      %v533 = vpop.xlane.xlu0 %532
      %v534 = vrot.slane %v530, 4
      %v535 = vadd.f32 %v530, %v534
      %v536 = vrot.slane %v535, 2
      %v537 = vadd.f32 %v535, %v536
      %v538 = vrot.slane %v537, 1
      %v539 = vadd.f32 %v537, %v538
      %v540 = vrot.slane %v533, 4
      %v541 = vadd.f32 %v533, %v540
      %v542 = vrot.slane %v541, 2
      %v543 = vadd.f32 %v541, %v542
      %v544 = vrot.slane %v543, 1
      %v545 = vadd.f32 %v543, %v544
      %v546 = vsel %vm524, 1, 0
      %v547 = vsel %vm525, 1, 0
      %v548 = vcvt.s32.f32 %v546
      %v549 = vcvt.s32.f32 %v547
      %v550 = vsel %vm431, %v548, 0.0
      %551 = vadd.xlane.f32.xlu0 %v550
      %v552 = vpop.xlane.xlu0 %551
      %v553 = vsel %vm431, %v549, 0.0
      %554 = vadd.xlane.f32.xlu0 %v553
      %v555 = vpop.xlane.xlu0 %554
      %v556 = vrot.slane %v552, 4
      %v557 = vadd.f32 %v552, %v556
      %v558 = vrot.slane %v557, 2
      %v559 = vadd.f32 %v557, %v558
      %v560 = vrot.slane %v559, 1
      %v561 = vadd.f32 %v559, %v560
      %v562 = vrot.slane %v555, 4
      %v563 = vadd.f32 %v555, %v562
      %v564 = vrot.slane %v563, 2
      %v565 = vadd.f32 %v563, %v564
      %v566 = vrot.slane %v565, 1
      %v567 = vadd.f32 %v565, %v566
      %v568 = vlaneseq
      %v569 = vand.u32 %v568, 127
      %vm570 = vcmp.eq.s32.totalorder %v569, 0
      %v571 = vsel %vm570, %v466, 0.0
      %v572 = vsel %vm570, %v472, 0.0
      %vm573 = vcmp.eq.s32.totalorder %v569, 1
      %v574 = vsel %vm573, %v488, 0.0
      %v575 = vsel %vm573, %v494, 0.0
      %v576 = vadd.f32 %v571, %v574
      %v577 = vadd.f32 %v572, %v575
      %vm578 = vcmp.eq.s32.totalorder %v569, 2
      %v579 = vsel %vm578, %v539, 0.0
      %v580 = vsel %vm578, %v545, 0.0
      %v581 = vadd.f32 %v576, %v579
      %v582 = vadd.f32 %v577, %v580
      %vm583 = vcmp.eq.s32.totalorder %v569, 3
      %v584 = vsel %vm583, %v561, 0.0
      %v585 = vsel %vm583, %v567, 0.0
      %v586 = vadd.f32 %v581, %v584
      %v587 = vadd.f32 %v582, %v585
      %588 = vst [vmem:[%s241] sm:$0x1] %v586
      %589 = vst [vmem:[%s241 + $0x1] sm:$0x1] %v587
      %s590 = smul.u32 2, %s15
      %p591 = scmp.lt.s32.totalorder %s590, 3
      %s592 = scalar_select %p591, %s590, 3
      %s593 = scalar_lea.vmem %s4, %s592
      // Predicated region
      $region37: #{part_adacont_loss.1} parent=35 // pred_check
        %p594 = pneg %p132
      $region38: #{part_adacont_loss.1} parent=35 // pred_check_branch
        %596 = sbr.rel (%p594) target = $region40
      $region39: #{part_adacont_loss.1} parent=35 // pred_region
        %s597 = smul.u32 2, %s15
      $region40: #{part_adacont_loss.1} parent=35 // pred_fallthru
        _
    $region36: #{part_adacont_loss.1} parent=5 // pred_fallthru
      _
    %p598 = scmp.le.s32.totalorder 2, %s10
    // Predicated region
    $region41: #{part_adacont_loss.1} parent=5 // pred_check
      %p599 = pneg %p598
    $region42: #{part_adacont_loss.1} parent=5 // pred_check_branch
      %601 = sbr.rel (%p599) target = $region44
    $region43: #{part_adacont_loss.1} parent=5 // pred_region
      %s602 = ssub.s32 %s10, 2
      // Predicated region
      $region45: #{part_adacont_loss.1} parent=43 // pred_check
        %p603 = pneg %p138
      $region46: #{part_adacont_loss.1} parent=43 // pred_check_branch
        %605 = sbr.rel (%p603) target = $region48
      $region47: #{part_adacont_loss.1} parent=43 // pred_region
        %s606 = smul.u32 2, %s16
        %p607 = scmp.lt.s32.totalorder %s606, 3
        %s608 = scalar_select %p607, %s606, 3
        %s609 = scalar_lea.vmem %s4, %s608
      $region48: #{part_adacont_loss.1} parent=43 // pred_fallthru
        _
    $region44: #{part_adacont_loss.1} parent=5 // pred_fallthru
      _
  $region6: #{part_adacont_loss.1} parent=0 // loop_footer
    %s14 = sadd.s32 1, %s10
  $region7: #{part_adacont_loss.1} parent=0 // loop_footer_branch
    %9 = sbr.rel target = $region3
  $region8: #{part_adacont_loss.1} parent=0 // loop_exit
    _

</llo_original>
